<compile_context>
chip_gen: v7x
topology: tpu7x:2x2x1
jax: 0.10.0
libtpu: 0.0.40
codegen_flags: <defaults>
</compile_context>

<pallas_src>
import jax
import jax.numpy as jnp
from jax.experimental import pallas as pl
from jax.experimental.pallas import tpu as pltpu


def _round_up(n: int, m: int) -> int:
    return ((n + m - 1) // m) * m


def policy_kernel(x_ref, w_ref, o_ref):
    # (TB, F) * (1, F) elementwise scale, then numerically stable softmax over
    # the feature (lane) axis.  No padding/masking: the block carries the full
    # feature extent, so the reductions see exactly the valid lanes.
    logits = x_ref[...] * w_ref[...]                      # VPU
    m = jnp.max(logits, axis=-1, keepdims=True)           # XLU reduce
    e = jnp.exp(logits - m)                               # EUP
    denom = jnp.sum(e, axis=-1, keepdims=True)            # XLU reduce
    inv = pl.reciprocal(denom, approx=False)              # EUP, exact (~1 ulp)
    o_ref[...] = e * inv


def _pick_batch_tile(B: int, F: int, *, max_tile: int = 2048,
                     min_tile: int = 256, target_blocks: int = 8) -> int:
    """Rows per block: multiple of 8 (or == B), sized for VMEM + megacore."""
    if B <= min_tile:
        return B                       # full-array block: single grid step
    # Aim for >= target_blocks grid steps so v7x's two TensorCores both get
    # work and per-core double-buffering still has blocks to overlap.
    tb = _round_up(pl.cdiv(B, target_blocks), 8)
    tb = max(min_tile, min(tb, max_tile))
    # Cap so double-buffered in+out tiles stay <= ~16 MiB (VMEM layout pads
    # the lane axis to 128), far under the 32 MiB scoped limit on all gens.
    row_bytes = _round_up(F, 128) * 4 * 2                 # in + out, f32
    bytes_cap = max(8, (8 * 1024 * 1024 // row_bytes) // 8 * 8)
    return max(8, min(tb, bytes_cap))


def policy_forward(x, w, *, max_batch_tile: int = 2048):
    """x: (B, F) float32, w: (1, F) float32 -> (B, F) float32 softmax probs."""
    B, F = x.shape
    assert w.shape == (1, F)
    x = x.astype(jnp.float32)
    w = w.astype(jnp.float32)

    TB = _pick_batch_tile(B, F, max_tile=max_batch_tile)
    grid = (pl.cdiv(B, TB),)           # ragged last block handled by Pallas

    return pl.pallas_call(
        policy_kernel,
        out_shape=jax.ShapeDtypeStruct((B, F), jnp.float32),
        grid=grid,
        in_specs=[
            pl.BlockSpec((TB, F), lambda i: (i, 0)),   # batch-tiled input
            pl.BlockSpec((1, F), lambda i: (0, 0)),    # weight stays resident
        ],
        out_specs=pl.BlockSpec((TB, F), lambda i: (i, 0)),
        compiler_params=pltpu.CompilerParams(
            dimension_semantics=("parallel",),         # shard blocks across TCs
            vmem_limit_bytes=32 * 1024 * 1024,
        ),
    )(x, w)


if __name__ == "__main__":
    input_features = 3
    batch = 2

    # Deterministic parameter matching the module's hard-coded fc1 weight.
    w = jnp.array([[1.0, 1.0, 5.0]], dtype=jnp.float32)   # (1, F)

    # Deterministic small input.
    key = jax.random.PRNGKey(0)
    x = jax.random.normal(key, (batch, input_features), dtype=jnp.float32)

    out = jax.block_until_ready(policy_forward(x, w))
    ref = jax.nn.softmax(x * w, axis=1)
    assert out.shape == (batch, input_features)
    assert jnp.allclose(out, ref, atol=1e-6, rtol=1e-6)

    # Multi-block pipelined path with a ragged last block (520 = 2*256 + 8).
    x2 = jax.random.normal(jax.random.PRNGKey(1), (520, input_features),
                           dtype=jnp.float32)
    out2 = jax.block_until_ready(policy_forward(x2, w))
    ref2 = jax.nn.softmax(x2 * w, axis=1)
    assert out2.shape == (520, input_features)
    assert jnp.allclose(out2, ref2, atol=1e-6, rtol=1e-6)

    # Ragged tail where B is NOT a multiple of 8 (tail rows must be exact).
    x3 = jax.random.normal(jax.random.PRNGKey(2), (517, input_features),
                           dtype=jnp.float32)
    out3 = jax.block_until_ready(policy_forward(x3, w))
    ref3 = jax.nn.softmax(x3 * w, axis=1)
    assert out3.shape == (517, input_features)
    assert jnp.allclose(out3, ref3, atol=1e-6, rtol=1e-6)

    # Wider feature axis (not a multiple of 128) + ragged batch.
    Fw = 200
    xw = jax.random.normal(jax.random.PRNGKey(3), (1031, Fw), dtype=jnp.float32)
    ww = jax.random.normal(jax.random.PRNGKey(4), (1, Fw), dtype=jnp.float32)
    outw = jax.block_until_ready(policy_forward(xw, ww))
    refw = jax.nn.softmax(xw * ww, axis=1)
    assert jnp.allclose(outw, refw, atol=1e-6, rtol=1e-6)

    print("KERNEL_OK")
</pallas_src>

<mosaic_0001>
module attributes {stable_mosaic.version = 11 : i64} {
  func.func @policy_kernel(%arg0: i32, %arg1: memref<2x3xf32, #tpu.memory_space<vmem>>, %arg2: memref<1x3xf32, #tpu.memory_space<vmem>>, %arg3: memref<2x3xf32, #tpu.memory_space<vmem>>) attributes {dimension_semantics = [#tpu.dimension_semantics<parallel>], iteration_bounds = array<i64: 1>, scalar_prefetch = 0 : i64, scratch_operands = 0 : i64, tpu.core_type = #tpu.core_type<tc>, window_params = [{transform_indices = @transform_0, window_bounds = array<i64: 2, 3>}, {pipeline_mode = #tpu.pipeline_mode<synchronous>, transform_indices = @transform_1, window_bounds = array<i64: 1, 3>}, {transform_indices = @transform_2, window_bounds = array<i64: 2, 3>}]} {
    %c0 = arith.constant 0 : index
    %c0_0 = arith.constant 0 : index
    %0 = vector.load %arg1[%c0, %c0_0] : memref<2x3xf32, #tpu.memory_space<vmem>>, vector<2x3xf32>
    %c0_1 = arith.constant 0 : index
    %c0_2 = arith.constant 0 : index
    %1 = vector.load %arg2[%c0_1, %c0_2] : memref<1x3xf32, #tpu.memory_space<vmem>>, vector<1x3xf32>
    %2 = vector.broadcast %1 : vector<1x3xf32> to vector<2x3xf32>
    %3 = arith.mulf %0, %2 : vector<2x3xf32>
    %cst = arith.constant dense<0xFF800000> : vector<2xf32>
    %4 = vector.multi_reduction <maximumf>, %3, %cst [1] : vector<2x3xf32> to vector<2xf32>
    %5 = vector.shape_cast %4 : vector<2xf32> to vector<2x1xf32>
    %6 = vector.broadcast %5 : vector<2x1xf32> to vector<2x3xf32>
    %7 = arith.subf %3, %6 : vector<2x3xf32>
    %8 = math.exp %7 : vector<2x3xf32>
    %cst_3 = arith.constant dense<0.000000e+00> : vector<2xf32>
    %9 = vector.multi_reduction <add>, %8, %cst_3 [1] : vector<2x3xf32> to vector<2xf32>
    %10 = vector.shape_cast %9 : vector<2xf32> to vector<2x1xf32>
    %11 = tpu.reciprocal %10 : vector<2x1xf32> -> vector<2x1xf32>
    %12 = vector.broadcast %11 : vector<2x1xf32> to vector<2x3xf32>
    %13 = arith.mulf %8, %12 : vector<2x3xf32>
    %c0_4 = arith.constant 0 : index
    %c0_5 = arith.constant 0 : index
    %14 = vector.load %arg3[%c0_4, %c0_5] : memref<2x3xf32, #tpu.memory_space<vmem>>, vector<2x3xf32>
    tpu.vector_store %arg3[%c0_4, %c0_5], %13 {strides = array<i32>} : memref<2x3xf32, #tpu.memory_space<vmem>>, vector<2x3xf32>,
    return
  }
  func.func @transform_0(%arg0: i32) -> (i32, i32) {
    %c0_i32 = arith.constant 0 : i32
    %c0_i32_0 = arith.constant 0 : i32
    return %arg0, %c0_i32 : i32, i32
  }
  func.func @transform_1(%arg0: i32) -> (i32, i32) {
    %c0_i32 = arith.constant 0 : i32
    %c0_i32_0 = arith.constant 0 : i32
    %c0_i32_1 = arith.constant 0 : i32
    return %c0_i32, %c0_i32_0 : i32, i32
  }
  func.func @transform_2(%arg0: i32) -> (i32, i32) {
    %c0_i32 = arith.constant 0 : i32
    %c0_i32_0 = arith.constant 0 : i32
    return %arg0, %c0_i32 : i32, i32
  }
}

</mosaic_0001>

<llo_original>
// kernel: tpu_custom_call.1
$region0: #{tpu_custom_call.1}
  #allocation0 [shape = 'u32[]', space=smem, size = 0x4, offset = 0x4, fixed_abs, tag = 'smem constant byte address 0x4 - core index']
  #allocation1 [shape = 'u32[144,128]{1,0:T(1,128)}', space=vmem, size = 0x12000, scoped, tag = 'internal scratch']
  %s0 = inlined_call_operand.hbm [shape: f32[2,3], index: 0, kind: input, shape index: {}]
  %s1 = inlined_call_operand.vmem [shape: f32[1,3], index: 1, kind: input, shape index: {}]
  %s2 = inlined_call_operand.hbm [shape: f32[2,3], index: 2, kind: output, shape index: {}]
  %s3 = sld [smem:[#allocation0]]
  $region22: #{tpu_custom_call.1} parent=0
    _
  %s5 = ssub.s32 1, %s3
  %s6 = scalar_select 0, %s5, %s3
  $region1: #{tpu_custom_call.1} parent=0
    #allocation2 [shape = 'u8[1024]{0}', space=vmem, size = 0x400, scoped, tag = 'input window, operand 0, single buffered']
    #allocation3 [shape = 's32[1]{0}', space=sflag, size = 0x4, scoped, tag = 'scoped memory for tpu_custom_call.1']
    #allocation4 [shape = 's32[1]{0}', space=sflag, size = 0x4, scoped, tag = 'scoped memory for tpu_custom_call.1']
    #allocation5 [shape = 'u8[1024]{0}', space=vmem, size = 0x400, scoped, tag = 'output window, operand 0, single buffered']
    %7 = vsyncpa [#allocation3], 0
    %8 = vsyncpa [#allocation4], 0
    // Predicated region
    $region2: #{tpu_custom_call.1} parent=1 // pred_check
      _
    $region3: #{tpu_custom_call.1} parent=1 // pred_check_branch
      %10 = sbr.rel (0) target = $region5
    $region4: #{tpu_custom_call.1} parent=1 // pred_region
      %s12 = ssub.s32 32, 32
      %13 = vsyncadd [#allocation3], %s12
      %s15 = sshll.u32 [#allocation2], 4
      %s16 = int_to_ptr.vmem [resolvable:$true] %s15
      %18 = dma.hbm_to_vmem [thread:$0]  %s0, 32, %s16, [#allocation3]
    $region5: #{tpu_custom_call.1} parent=1 // pred_fallthru
      _
    // Predicated region
    $region6: #{tpu_custom_call.1} parent=1 // pred_check
      _
    $region7: #{tpu_custom_call.1} parent=1 // pred_check_branch
      %20 = sbr.rel (0) target = $region9
    $region8: #{tpu_custom_call.1} parent=1 // pred_region
      _
    $region9: #{tpu_custom_call.1} parent=1 // pred_fallthru
      _
    // Predicated region
    $region10: #{tpu_custom_call.1} parent=1 // pred_check
      _
    $region11: #{tpu_custom_call.1} parent=1 // pred_check_branch
      %22 = sbr.rel (0) target = $region13
    $region12: #{tpu_custom_call.1} parent=1 // pred_region
      %23 = dma.done [#allocation3], 32
    $region13: #{tpu_custom_call.1} parent=1 // pred_fallthru
      _
    %v24 = vld [vmem:[#allocation2] sm:$0x3]
    %v25 = vld [vmem:[%s1] sm:$0x1]
    %v27 = vlaneseq
    %v28 = vshrl.u32 %v27, 7
    %v29 = vsub.s32 0, %v28
    %v30 = vrot.slane %v25, %v29
    %v32 = vmul.f32 %v24, %v30
    %vm33 = vcmask 17408
    %v34 = vsel %vm33, %v32, -inf
    %35 = vmax.xlane.f32.xlu0 %v34
    %v36 = vpop.xlane.xlu0 %35
    %v37 = vsub.f32 %v32, %v36
    %v38 = vmul.f32 %v37, 1.442695
    %v39 = vpow.pop %v38
    %v40 = vsel %vm33, %v39, 0.0
    %41 = vadd.xlane.f32.xlu0 %v40
    %v42 = vpop.xlane.xlu0 %41
    %v43 = vrcp.pop %v42
    %v44 = vmul.f32 %v39, %v43
    %45 = vst.msk [vmem:[#allocation5] sm:$0x3] %vm33, %v44
    // Predicated region
    $region14: #{tpu_custom_call.1} parent=1 // pred_check
      _
    $region15: #{tpu_custom_call.1} parent=1 // pred_check_branch
      %47 = sbr.rel (0) target = $region17
    $region16: #{tpu_custom_call.1} parent=1 // pred_region
      %s49 = ssub.s32 32, 32
      %50 = vsyncadd [#allocation4], %s49
      %s52 = sshll.u32 [#allocation5], 4
      %s53 = int_to_ptr.vmem [resolvable:$true] %s52
      %55 = dma.vmem_to_hbm [thread:$0]  %s53, 32, %s2, [#allocation4]
    $region17: #{tpu_custom_call.1} parent=1 // pred_fallthru
      _
    // Predicated region
    $region18: #{tpu_custom_call.1} parent=1 // pred_check
      _
    $region19: #{tpu_custom_call.1} parent=1 // pred_check_branch
      %57 = sbr.rel (0) target = $region21
    $region20: #{tpu_custom_call.1} parent=1 // pred_region
      %58 = dma.done [#allocation4], 32
    $region21: #{tpu_custom_call.1} parent=1 // pred_fallthru
      _
    %59 = vsyncpa [#allocation3], 1
    %60 = vsyncpa [#allocation4], 1

</llo_original>
